<compile_context>
chip_gen: v7x
topology: tpu7x:2x2x1
jax: 0.10.0
libtpu: 0.0.40
codegen_flags: <defaults>
</compile_context>

<pallas_src>
import jax
import jax.numpy as jnp
from jax import lax
from jax.experimental import pallas as pl
from jax.experimental.pallas import tpu as pltpu


# --------------------------------------------------------------------------- #
# Kernel
# --------------------------------------------------------------------------- #
def _make_kernel(has_mask: bool, with_attention: bool, bb: int, t: int):
    """Kernel over one (bb, T, D) block of sentences."""

    def kernel(*refs):
        it = iter(refs)
        x_ref = next(it)                                   # (bb, T, D)
        wi_ref = next(it)                                  # (D, A)
        wo_ref = next(it)                                  # (A, R)
        m_ref = next(it) if has_mask else None             # (bb, T, 1)
        attn_ref = next(it) if with_attention else None    # (bb, T, R)
        rep_ref = next(it)                                 # (bb, R, D)
        pen_ref = next(it)                                 # (bb, 1, 1)

        x = x_ref[...]                                     # native dtype (bf16 OK)
        d = x.shape[-1]

        # ---- projections: fold the batch block into the MXU rows ------------
        x2 = x.reshape(bb * t, d)                          # (bb*T, D)
        h = jnp.tanh(jnp.dot(x2, wi_ref[...],
                             preferred_element_type=jnp.float32))   # (bb*T, A)
        logits = jnp.dot(h, wo_ref[...],
                         preferred_element_type=jnp.float32)        # (bb*T, R)
        r = logits.shape[-1]
        logits = logits.reshape(bb, t, r)                  # (bb, T, R)

        # ---- masked softmax over the timestep axis (axis=1) ------------------
        if has_mask:
            m = m_ref[...].astype(jnp.float32)             # (bb, T, 1)
            ml = logits * m
            e = jnp.exp(ml - jnp.max(ml, axis=1, keepdims=True))
            p = e / jnp.sum(e, axis=1, keepdims=True)
            p = p * m
            p = p / (jnp.sum(p, axis=1, keepdims=True) + 1e-13)
        else:
            e = jnp.exp(logits - jnp.max(logits, axis=1, keepdims=True))
            p = e / jnp.sum(e, axis=1, keepdims=True)

        if with_attention:
            attn_ref[...] = p.astype(attn_ref.dtype)

        # ---- attended representation: rep[b] = p[b]^T @ x[b] (batched MXU) ---
        rep = lax.dot_general(p.astype(x.dtype), x,
                              (((1,), (1,)), ((0,), (0,))),
                              preferred_element_type=jnp.float32)    # (bb, R, D)
        rep_ref[...] = rep.astype(rep_ref.dtype)

        # ---- Frobenius penalty via the Gram identity --------------------------
        # ||A A^T - I_T||_F^2 == ||A^T A||_F^2 - 2 ||A||_F^2 + T   (exact)
        g = lax.dot_general(p, p, (((1,), (1,)), ((0,), (0,))),
                            preferred_element_type=jnp.float32)      # (bb, R, R)
        gsq = jnp.sum(jnp.sum(g * g, axis=2, keepdims=True), axis=1, keepdims=True)
        psq = jnp.sum(jnp.sum(p * p, axis=2, keepdims=True), axis=1, keepdims=True)
        pen_ref[...] = gsq - 2.0 * psq + jnp.float32(t)    # (bb, 1, 1)

    return kernel


# --------------------------------------------------------------------------- #
# Block-size / VMEM heuristics
# --------------------------------------------------------------------------- #
def _choose_batch_block(B, T, D, R, x_bytes, vmem_budget=24 * 1024 * 1024):
    """Pick how many sentences to process per grid step."""
    target_rows = 256                      # fills the v6e/v7x 256-wide MXU (>=128 for v5e)
    bb = min(B, max(1, -(-target_rows // T)))
    # Prefer >= 2 grid steps (v7x has 2 TensorCores/chip) when it doesn't starve the MXU.
    if bb == B and B >= 2 and (B // 2) * T >= target_rows // 2:
        bb = B // 2
    # Respect a VMEM budget: input tile is double-buffered, plus output tiles.
    per_sentence = 2 * T * D * x_bytes + 2 * T * R * 4 + 2 * R * D * 4 + 8
    while bb > 1 and bb * per_sentence > vmem_budget:
        bb -= 1
    # bb must divide B so every block is full (keeps softmax / penalty exact).
    while B % bb:
        bb -= 1
    return bb


def _vmem_limit_bytes(bb, T, D, A, R, x_bytes, has_mask, with_attention):
    need = 2 * bb * T * D * x_bytes          # inputs (double-buffered)
    need += 2 * (D * A + A * R) * 4          # weights (grid-invariant, still 2 bufs)
    if has_mask:
        need += 2 * bb * T * x_bytes
    if with_attention:
        need += 2 * bb * T * R * 4
    need += 2 * bb * R * D * 4               # representation
    need += 2 * bb * 4                       # penalty
    # Headroom for f32 intermediates; stay well under v7x's 64 MiB physical VMEM,
    # but above v5e's 16 MiB default scoped limit.
    return int(min(max(4 * need, 32 * 1024 * 1024), 56 * 1024 * 1024))


# --------------------------------------------------------------------------- #
# Wrapper
# --------------------------------------------------------------------------- #
def self_attentive_sentence_encoder(inputs, w_inner, w_outer, mask=None,
                                    regularization_coefficient=1.0,
                                    return_attention=True,
                                    batch_block=None):
    """inputs: (B, T, D); w_inner: (D, A); w_outer: (A, R); mask: (B, T) or None.

    Weights are pre-transposed so both projections are plain `x @ W` matmuls.
    """
    B, T, D = inputs.shape
    A = w_inner.shape[1]
    R = w_outer.shape[1]
    has_mask = mask is not None
    x_bytes = jnp.dtype(inputs.dtype).itemsize

    BB = batch_block if batch_block is not None else _choose_batch_block(
        B, T, D, R, x_bytes)
    assert B % BB == 0, "batch_block must divide the batch size"
    grid = (B // BB,)

    in_specs = [
        pl.BlockSpec((BB, T, D), lambda b: (b, 0, 0)),   # inputs block
        pl.BlockSpec((D, A), lambda b: (0, 0)),          # W_inner^T (grid-invariant)
        pl.BlockSpec((A, R), lambda b: (0, 0)),          # W_outer^T (grid-invariant)
    ]
    args = [inputs, w_inner, w_outer]
    if has_mask:
        in_specs.append(pl.BlockSpec((BB, T, 1), lambda b: (b, 0, 0)))
        args.append(mask.reshape(B, T, 1).astype(inputs.dtype))

    out_shapes = []
    out_specs = []
    if return_attention:
        out_shapes.append(jax.ShapeDtypeStruct((B, T, R), jnp.float32))
        out_specs.append(pl.BlockSpec((BB, T, R), lambda b: (b, 0, 0)))
    out_shapes.append(jax.ShapeDtypeStruct((B, R, D), jnp.float32))
    out_specs.append(pl.BlockSpec((BB, R, D), lambda b: (b, 0, 0)))
    out_shapes.append(jax.ShapeDtypeStruct((B, 1, 1), jnp.float32))
    out_specs.append(pl.BlockSpec((BB, 1, 1), lambda b: (b, 0, 0)))

    outs = pl.pallas_call(
        _make_kernel(has_mask, return_attention, BB, T),
        out_shape=tuple(out_shapes),
        grid_spec=pltpu.PrefetchScalarGridSpec(
            num_scalar_prefetch=0,
            grid=grid,
            in_specs=in_specs,
            out_specs=tuple(out_specs),
        ),
        compiler_params=pltpu.CompilerParams(
            dimension_semantics=("parallel",),
            vmem_limit_bytes=_vmem_limit_bytes(BB, T, D, A, R, x_bytes,
                                               has_mask, return_attention)),
    )(*args)

    outs = list(outs)
    outputs = {}
    if return_attention:
        outputs["attention"] = outs.pop(0)               # (B, T, R)
    rep = outs.pop(0)                                    # (B, R, D)
    pen_sq = outs.pop(0)                                 # (B, 1, 1)
    outputs["representation"] = rep.reshape(B, R * D)    # (B, R*D)
    if regularization_coefficient:
        outputs["regularization_loss"] = jnp.sum(
            jnp.sqrt(jnp.maximum(pen_sq[:, 0, 0], 0.0))) / B
    return outputs


# --------------------------------------------------------------------------- #
# Plain-JAX reference mirroring the PyTorch forward
# --------------------------------------------------------------------------- #
def _reference(inputs, w_inner, w_outer, mask=None):
    h = jnp.tanh(inputs @ w_inner)
    logits = h @ w_outer
    if mask is not None:
        m = mask[:, :, None].astype(inputs.dtype)
        p = jax.nn.softmax(logits * m, axis=1)
        p = p * m
        p = p / (jnp.sum(p, axis=1, keepdims=True) + 1e-13)
    else:
        p = jax.nn.softmax(logits, axis=1)
    rep = jnp.einsum("btr,btd->brd", p, inputs).reshape(inputs.shape[0], -1)
    T = inputs.shape[1]
    aat = jnp.einsum("btr,bsr->bts", p, p)
    delta = aat - jnp.eye(T, dtype=p.dtype)[None]
    pen = jnp.sum(jnp.sqrt(jnp.sum(delta ** 2, axis=(1, 2)))) / inputs.shape[0]
    return {"attention": p, "representation": rep, "regularization_loss": pen}


# --------------------------------------------------------------------------- #
# Demo / correctness check
# --------------------------------------------------------------------------- #
if __name__ == "__main__":
    B, T, D = 2, 8, 32          # batch, timesteps, input_dim
    A, R = 16, 4                # attention_size (d_a), num_attention_heads (r)

    key = jax.random.PRNGKey(0)
    k_x, k_wi, k_wo, k_x2 = jax.random.split(key, 4)

    inputs = jax.random.normal(k_x, (B, T, D), dtype=jnp.float32)
    # torch.nn.Linear weight init ~ uniform(-0.1, 0.1); stored pre-transposed.
    w_inner = jax.random.uniform(k_wi, (D, A), jnp.float32, -0.1, 0.1)
    w_outer = jax.random.uniform(k_wo, (A, R), jnp.float32, -0.1, 0.1)
    # mask: last two timesteps of batch element 1 are padding.
    mask = jnp.array([[1.] * T, [1.] * (T - 2) + [0., 0.]], dtype=jnp.float32)

    # --- masked path ------------------------------------------------------- #
    out = self_attentive_sentence_encoder(inputs, w_inner, w_outer, mask=mask,
                                          regularization_coefficient=1.0)
    jax.block_until_ready(out)
    ref = _reference(inputs, w_inner, w_outer, mask=mask)
    assert out["attention"].shape == (B, T, R)
    assert out["representation"].shape == (B, R * D)
    assert jnp.allclose(out["attention"], ref["attention"], atol=1e-5, rtol=1e-5)
    assert jnp.allclose(out["representation"], ref["representation"], atol=1e-5, rtol=1e-5)
    assert jnp.allclose(out["regularization_loss"], ref["regularization_loss"],
                        atol=1e-5, rtol=1e-5)

    # --- mask=None path (no dummy-mask DMA is issued) ----------------------- #
    out_nm = self_attentive_sentence_encoder(inputs, w_inner, w_outer, mask=None)
    jax.block_until_ready(out_nm)
    ref_nm = _reference(inputs, w_inner, w_outer, mask=None)
    assert jnp.allclose(out_nm["attention"], ref_nm["attention"], atol=1e-5, rtol=1e-5)
    assert jnp.allclose(out_nm["representation"], ref_nm["representation"],
                        atol=1e-5, rtol=1e-5)

    # --- attention output elided (representation/penalty only) -------------- #
    out_na = self_attentive_sentence_encoder(inputs, w_inner, w_outer, mask=mask,
                                             return_attention=False)
    jax.block_until_ready(out_na)
    assert "attention" not in out_na
    assert jnp.allclose(out_na["representation"], ref["representation"],
                        atol=1e-5, rtol=1e-5)
    assert jnp.allclose(out_na["regularization_loss"], ref["regularization_loss"],
                        atol=1e-5, rtol=1e-5)

    # --- multi-step grid: batch larger than the block, BB < B --------------- #
    B2 = 16
    inputs2 = jax.random.normal(k_x2, (B2, T, D), dtype=jnp.float32)
    mask2 = jnp.ones((B2, T), dtype=jnp.float32).at[:, -2:].set(0.0)
    out2 = self_attentive_sentence_encoder(inputs2, w_inner, w_outer, mask=mask2,
                                           regularization_coefficient=1.0,
                                           batch_block=8)   # grid=(2,), both v7x TCs busy
    jax.block_until_ready(out2)
    ref2 = _reference(inputs2, w_inner, w_outer, mask=mask2)
    assert jnp.allclose(out2["attention"], ref2["attention"], atol=1e-5, rtol=1e-5)
    assert jnp.allclose(out2["representation"], ref2["representation"],
                        atol=1e-5, rtol=1e-5)
    assert jnp.allclose(out2["regularization_loss"], ref2["regularization_loss"],
                        atol=1e-5, rtol=1e-5)

    print("KERNEL_OK")
</pallas_src>

<mosaic_0001>
module attributes {stable_mosaic.version = 11 : i64} {
  func.func @kernel(%arg0: i32, %arg1: memref<2x8x32xf32, #tpu.memory_space<vmem>>, %arg2: memref<32x16xf32, #tpu.memory_space<vmem>>, %arg3: memref<16x4xf32, #tpu.memory_space<vmem>>, %arg4: memref<2x8x1xf32, #tpu.memory_space<vmem>>, %arg5: memref<2x8x4xf32, #tpu.memory_space<vmem>>, %arg6: memref<2x4x32xf32, #tpu.memory_space<vmem>>, %arg7: memref<2x1x1xf32, #tpu.memory_space<vmem>>) attributes {dimension_semantics = [#tpu.dimension_semantics<parallel>], iteration_bounds = array<i64: 1>, scalar_prefetch = 0 : i64, scratch_operands = 0 : i64, tpu.core_type = #tpu.core_type<tc>, window_params = [{transform_indices = @transform_0, window_bounds = array<i64: 2, 8, 32>}, {pipeline_mode = #tpu.pipeline_mode<synchronous>, transform_indices = @transform_1, window_bounds = array<i64: 32, 16>}, {pipeline_mode = #tpu.pipeline_mode<synchronous>, transform_indices = @transform_2, window_bounds = array<i64: 16, 4>}, {transform_indices = @transform_3, window_bounds = array<i64: 2, 8, 1>}, {transform_indices = @transform_4, window_bounds = array<i64: 2, 8, 4>}, {transform_indices = @transform_5, window_bounds = array<i64: 2, 4, 32>}, {transform_indices = @transform_6, window_bounds = array<i64: 2, 1, 1>}]} {
    %c0 = arith.constant 0 : index
    %c0_0 = arith.constant 0 : index
    %c0_1 = arith.constant 0 : index
    %0 = vector.load %arg1[%c0, %c0_0, %c0_1] : memref<2x8x32xf32, #tpu.memory_space<vmem>>, vector<2x8x32xf32>
    %1 = vector.shape_cast %0 : vector<2x8x32xf32> to vector<16x32xf32>
    %c0_2 = arith.constant 0 : index
    %c0_3 = arith.constant 0 : index
    %2 = vector.load %arg2[%c0_2, %c0_3] : memref<32x16xf32, #tpu.memory_space<vmem>>, vector<32x16xf32>
    %cst = arith.constant dense<0.000000e+00> : vector<16x16xf32>
    %3 = tpu.matmul %1, %2, %cst {dimension_numbers = #tpu.dot_dimension_numbers<[1], [0], [0], [1], [0, 0, 1, 1], [], []>} : vector<16x32xf32>, vector<32x16xf32>, vector<16x16xf32> -> vector<16x16xf32>
    %4 = math.tanh %3 : vector<16x16xf32>
    %c0_4 = arith.constant 0 : index
    %c0_5 = arith.constant 0 : index
    %5 = vector.load %arg3[%c0_4, %c0_5] : memref<16x4xf32, #tpu.memory_space<vmem>>, vector<16x4xf32>
    %cst_6 = arith.constant dense<0.000000e+00> : vector<16x4xf32>
    %6 = tpu.matmul %4, %5, %cst_6 {dimension_numbers = #tpu.dot_dimension_numbers<[1], [0], [0], [1], [0, 0, 1, 1], [], []>} : vector<16x16xf32>, vector<16x4xf32>, vector<16x4xf32> -> vector<16x4xf32>
    %7 = vector.shape_cast %6 : vector<16x4xf32> to vector<2x8x4xf32>
    %c0_7 = arith.constant 0 : index
    %c0_8 = arith.constant 0 : index
    %c0_9 = arith.constant 0 : index
    %8 = vector.load %arg4[%c0_7, %c0_8, %c0_9] : memref<2x8x1xf32, #tpu.memory_space<vmem>>, vector<2x8x1xf32>
    %9 = vector.broadcast %8 : vector<2x8x1xf32> to vector<2x8x4xf32>
    %10 = arith.mulf %7, %9 : vector<2x8x4xf32>
    %cst_10 = arith.constant dense<0xFF800000> : vector<2x4xf32>
    %11 = vector.multi_reduction <maximumf>, %10, %cst_10 [1] : vector<2x8x4xf32> to vector<2x4xf32>
    %12 = vector.shape_cast %11 : vector<2x4xf32> to vector<2x1x4xf32>
    %13 = vector.broadcast %12 : vector<2x1x4xf32> to vector<2x8x4xf32>
    %14 = arith.subf %10, %13 : vector<2x8x4xf32>
    %15 = math.exp %14 : vector<2x8x4xf32>
    %cst_11 = arith.constant dense<0.000000e+00> : vector<2x4xf32>
    %16 = vector.multi_reduction <add>, %15, %cst_11 [1] : vector<2x8x4xf32> to vector<2x4xf32>
    %17 = vector.shape_cast %16 : vector<2x4xf32> to vector<2x1x4xf32>
    %18 = vector.broadcast %17 : vector<2x1x4xf32> to vector<2x8x4xf32>
    %19 = arith.divf %15, %18 : vector<2x8x4xf32>
    %20 = vector.broadcast %8 : vector<2x8x1xf32> to vector<2x8x4xf32>
    %21 = arith.mulf %19, %20 : vector<2x8x4xf32>
    %cst_12 = arith.constant dense<0.000000e+00> : vector<2x4xf32>
    %22 = vector.multi_reduction <add>, %21, %cst_12 [1] : vector<2x8x4xf32> to vector<2x4xf32>
    %23 = vector.shape_cast %22 : vector<2x4xf32> to vector<2x1x4xf32>
    %cst_13 = arith.constant 9.99999982E-14 : f32
    %24 = vector.broadcast %cst_13 : f32 to vector<2x1x4xf32>
    %25 = arith.addf %23, %24 : vector<2x1x4xf32>
    %26 = vector.broadcast %25 : vector<2x1x4xf32> to vector<2x8x4xf32>
    %27 = arith.divf %21, %26 : vector<2x8x4xf32>
    %c0_14 = arith.constant 0 : index
    %c0_15 = arith.constant 0 : index
    %c0_16 = arith.constant 0 : index
    %28 = vector.load %arg5[%c0_14, %c0_15, %c0_16] : memref<2x8x4xf32, #tpu.memory_space<vmem>>, vector<2x8x4xf32>
    tpu.vector_store %arg5[%c0_14, %c0_15, %c0_16], %27 {strides = array<i32>} : memref<2x8x4xf32, #tpu.memory_space<vmem>>, vector<2x8x4xf32>,
    %cst_17 = arith.constant dense<0.000000e+00> : vector<2x4x32xf32>
    %29 = tpu.matmul %27, %0, %cst_17 {dimension_numbers = #tpu.dot_dimension_numbers<[1], [1], [2], [2], [0, 0, 0, 2, 1, 2], [0], [0]>} : vector<2x8x4xf32>, vector<2x8x32xf32>, vector<2x4x32xf32> -> vector<2x4x32xf32>
    %c0_18 = arith.constant 0 : index
    %c0_19 = arith.constant 0 : index
    %c0_20 = arith.constant 0 : index
    %30 = vector.load %arg6[%c0_18, %c0_19, %c0_20] : memref<2x4x32xf32, #tpu.memory_space<vmem>>, vector<2x4x32xf32>
    tpu.vector_store %arg6[%c0_18, %c0_19, %c0_20], %29 {strides = array<i32>} : memref<2x4x32xf32, #tpu.memory_space<vmem>>, vector<2x4x32xf32>,
    %cst_21 = arith.constant dense<0.000000e+00> : vector<2x4x4xf32>
    %31 = tpu.matmul %27, %27, %cst_21 {dimension_numbers = #tpu.dot_dimension_numbers<[1], [1], [2], [2], [0, 0, 0, 2, 1, 2], [0], [0]>} : vector<2x8x4xf32>, vector<2x8x4xf32>, vector<2x4x4xf32> -> vector<2x4x4xf32>
    %32 = arith.mulf %31, %31 : vector<2x4x4xf32>
    %cst_22 = arith.constant dense<0.000000e+00> : vector<2x4xf32>
    %33 = vector.multi_reduction <add>, %32, %cst_22 [2] : vector<2x4x4xf32> to vector<2x4xf32>
    %34 = vector.shape_cast %33 : vector<2x4xf32> to vector<2x4x1xf32>
    %cst_23 = arith.constant dense<0.000000e+00> : vector<2x1xf32>
    %35 = vector.multi_reduction <add>, %34, %cst_23 [1] : vector<2x4x1xf32> to vector<2x1xf32>
    %36 = vector.shape_cast %35 : vector<2x1xf32> to vector<2x1x1xf32>
    %37 = arith.mulf %27, %27 : vector<2x8x4xf32>
    %cst_24 = arith.constant dense<0.000000e+00> : vector<2x8xf32>
    %38 = vector.multi_reduction <add>, %37, %cst_24 [2] : vector<2x8x4xf32> to vector<2x8xf32>
    %39 = vector.shape_cast %38 : vector<2x8xf32> to vector<2x8x1xf32>
    %cst_25 = arith.constant dense<0.000000e+00> : vector<2x1xf32>
    %40 = vector.multi_reduction <add>, %39, %cst_25 [1] : vector<2x8x1xf32> to vector<2x1xf32>
    %41 = vector.shape_cast %40 : vector<2x1xf32> to vector<2x1x1xf32>
    %cst_26 = arith.constant 2.000000e+00 : f32
    %42 = vector.broadcast %cst_26 : f32 to vector<2x1x1xf32>
    %43 = arith.mulf %42, %41 : vector<2x1x1xf32>
    %44 = arith.subf %36, %43 : vector<2x1x1xf32>
    %cst_27 = arith.constant 8.000000e+00 : f32
    %45 = vector.broadcast %cst_27 : f32 to vector<2x1x1xf32>
    %46 = arith.addf %44, %45 : vector<2x1x1xf32>
    %c0_28 = arith.constant 0 : index
    %c0_29 = arith.constant 0 : index
    %c0_30 = arith.constant 0 : index
    %47 = vector.load %arg7[%c0_28, %c0_29, %c0_30] : memref<2x1x1xf32, #tpu.memory_space<vmem>>, vector<2x1x1xf32>
    tpu.vector_store %arg7[%c0_28, %c0_29, %c0_30], %46 {strides = array<i32>} : memref<2x1x1xf32, #tpu.memory_space<vmem>>, vector<2x1x1xf32>,
    return
  }
  func.func @transform_0(%arg0: i32) -> (i32, i32, i32) {
    %c0_i32 = arith.constant 0 : i32
    %c0_i32_0 = arith.constant 0 : i32
    %c0_i32_1 = arith.constant 0 : i32
    return %arg0, %c0_i32, %c0_i32_0 : i32, i32, i32
  }
  func.func @transform_1(%arg0: i32) -> (i32, i32) {
    %c0_i32 = arith.constant 0 : i32
    %c0_i32_0 = arith.constant 0 : i32
    %c0_i32_1 = arith.constant 0 : i32
    return %c0_i32, %c0_i32_0 : i32, i32
  }
  func.func @transform_2(%arg0: i32) -> (i32, i32) {
    %c0_i32 = arith.constant 0 : i32
    %c0_i32_0 = arith.constant 0 : i32
    %c0_i32_1 = arith.constant 0 : i32
    return %c0_i32, %c0_i32_0 : i32, i32
  }
  func.func @transform_3(%arg0: i32) -> (i32, i32, i32) {
    %c0_i32 = arith.constant 0 : i32
    %c0_i32_0 = arith.constant 0 : i32
    %c0_i32_1 = arith.constant 0 : i32
    return %arg0, %c0_i32, %c0_i32_0 : i32, i32, i32
  }
  func.func @transform_4(%arg0: i32) -> (i32, i32, i32) {
    %c0_i32 = arith.constant 0 : i32
    %c0_i32_0 = arith.constant 0 : i32
    %c0_i32_1 = arith.constant 0 : i32
    return %arg0, %c0_i32, %c0_i32_0 : i32, i32, i32
  }
  func.func @transform_5(%arg0: i32) -> (i32, i32, i32) {
    %c0_i32 = arith.constant 0 : i32
    %c0_i32_0 = arith.constant 0 : i32
    %c0_i32_1 = arith.constant 0 : i32
    return %arg0, %c0_i32, %c0_i32_0 : i32, i32, i32
  }
  func.func @transform_6(%arg0: i32) -> (i32, i32, i32) {
    %c0_i32 = arith.constant 0 : i32
    %c0_i32_0 = arith.constant 0 : i32
    %c0_i32_1 = arith.constant 0 : i32
    return %arg0, %c0_i32, %c0_i32_0 : i32, i32, i32
  }
}

</mosaic_0001>

<llo_original>
// kernel: tpu_custom_call.1
$region0: #{tpu_custom_call.1}
  #allocation0 [shape = 'u32[]', space=smem, size = 0x4, offset = 0x4, fixed_abs, tag = 'smem constant byte address 0x4 - core index']
  #allocation1 [shape = 'u32[144,128]{1,0:T(1,128)}', space=vmem, size = 0x12000, scoped, tag = 'internal scratch']
  %s0 = inlined_call_operand.vmem [shape: f32[2,8,32], index: 0, kind: input, shape index: {}]
  %s1 = inlined_call_operand.vmem [shape: f32[32,16], index: 1, kind: input, shape index: {}]
  %s2 = inlined_call_operand.vmem [shape: f32[16,4], index: 2, kind: input, shape index: {}]
  %s3 = inlined_call_operand.vmem [shape: f32[2,8,1], index: 3, kind: input, shape index: {}]
  %s4 = inlined_call_operand.vmem [shape: f32[2,8,4], index: 4, kind: output, shape index: {0}]
  %s5 = inlined_call_operand.hbm [shape: f32[2,4,32], index: 5, kind: output, shape index: {1}]
  %s6 = inlined_call_operand.vmem [shape: f32[2,1,1], index: 6, kind: output, shape index: {2}]
  %7 = xla_tuple %s4, %s5, %s6
  %s8 = sld [smem:[#allocation0]]
  $region42: #{tpu_custom_call.1} parent=0
    _
  %s10 = ssub.s32 1, %s8
  %s11 = scalar_select 0, %s10, %s8
  $region1: #{tpu_custom_call.1} parent=0
    #allocation2 [shape = 'u8[4096]{0}', space=vmem, size = 0x1000, scoped, tag = 'output window, operand 1, single buffered']
    #allocation3 [shape = 's32[1]{0}', space=sflag, size = 0x4, scoped, tag = 'scoped memory for tpu_custom_call.1']
    %12 = vsyncpa [#allocation3], 0
    // Predicated region
    $region2: #{tpu_custom_call.1} parent=1 // pred_check
      _
    $region3: #{tpu_custom_call.1} parent=1 // pred_check_branch
      %14 = sbr.rel (0) target = $region5
    $region4: #{tpu_custom_call.1} parent=1 // pred_region
      _
    $region5: #{tpu_custom_call.1} parent=1 // pred_fallthru
      _
    // Predicated region
    $region6: #{tpu_custom_call.1} parent=1 // pred_check
      _
    $region7: #{tpu_custom_call.1} parent=1 // pred_check_branch
      %16 = sbr.rel (0) target = $region9
    $region8: #{tpu_custom_call.1} parent=1 // pred_region
      _
    $region9: #{tpu_custom_call.1} parent=1 // pred_fallthru
      _
    // Predicated region
    $region10: #{tpu_custom_call.1} parent=1 // pred_check
      _
    $region11: #{tpu_custom_call.1} parent=1 // pred_check_branch
      %18 = sbr.rel (0) target = $region13
    $region12: #{tpu_custom_call.1} parent=1 // pred_region
      _
    $region13: #{tpu_custom_call.1} parent=1 // pred_fallthru
      _
    // Predicated region
    $region14: #{tpu_custom_call.1} parent=1 // pred_check
      _
    $region15: #{tpu_custom_call.1} parent=1 // pred_check_branch
      %20 = sbr.rel (0) target = $region17
    $region16: #{tpu_custom_call.1} parent=1 // pred_region
      _
    $region17: #{tpu_custom_call.1} parent=1 // pred_fallthru
      _
    %v21 = vld [vmem:[%s0] sm:$0xff]
    %v22 = vld [vmem:[%s0 + $0x8] sm:$0xff]
    %v23 = vld [vmem:[%s1] sm:$0xff]
    %v24 = vld [vmem:[%s1 + $0x8] sm:$0xff]
    %v25 = vld [vmem:[%s1 + $0x10] sm:$0xff]
    %v26 = vld [vmem:[%s1 + $0x18] sm:$0xff]
    %vm27 = vcmask 261120
    %v29 = vsel %vm27, %v21, 0
    %v32 = vsel %vm27, %v22, 0
    %34 = vmatprep.subr.mxu0 0.0
    %35 = vmatpush1.msra.mxu0 %v23
    %36 = vmatprep.subr.mxu0 0.0
    %37 = vmatpush1.msra.mxu0 %v24
    %38 = vmatprep.subr.mxu0 0.0
    %39 = vmatpush1.msra.mxu0 %v25
    %40 = vmatprep.subr.mxu0 0.0
    %41 = vmatpush1.msra.mxu0 %v26
    %42 = vmatprep.subr.mxu0 0.0
    %43 = vmatpush1.msra.mxu0 0.0
    %44 = vmatprep.subr.mxu0 0.0
    %45 = vmatpush1.msra.mxu0 0.0
    %46 = vmatprep.subr.mxu0 0.0
    %47 = vmatpush1.msra.mxu0 0.0
    %48 = vmatprep.subr.mxu0 0.0
    %49 = vmatpush1.msra.mxu0 0.0
    %50 = vmatprep.subr.mxu0 0.0
    %51 = vmatpush1.msra.mxu0 0.0
    %52 = vmatprep.subr.mxu0 0.0
    %53 = vmatpush1.msra.mxu0 0.0
    %54 = vmatprep.subr.mxu0 0.0
    %55 = vmatpush1.msra.mxu0 0.0
    %56 = vmatprep.subr.mxu0 0.0
    %57 = vmatpush1.msra.mxu0 0.0
    %58 = vmatprep.subr.mxu0 0.0
    %59 = vmatpush1.msra.mxu0 0.0
    %60 = vmatprep.subr.mxu0 0.0
    %61 = vmatpush1.msra.mxu0 0.0
    %62 = vmatprep.subr.mxu0 0.0
    %63 = vmatpush1.msra.mxu0 0.0
    %64 = vmatprep.subr.mxu0 0.0
    %65 = vmatpush1.msra.mxu0 0.0
    %66 = vmatprep.subr.mxu0 0.0
    %67 = vmatpush1.msra.mxu0 0.0
    %68 = vmatprep.subr.mxu0 0.0
    %69 = vmatpush1.msra.mxu0 0.0
    %70 = vmatprep.subr.mxu0 0.0
    %71 = vmatpush1.msra.mxu0 0.0
    %72 = vmatprep.subr.mxu0 0.0
    %73 = vmatpush1.msra.mxu0 0.0
    %74 = vmatprep.subr.mxu0 0.0
    %75 = vmatpush1.msra.mxu0 0.0
    %76 = vmatprep.subr.mxu0 0.0
    %77 = vmatpush1.msra.mxu0 0.0
    %78 = vmatprep.subr.mxu0 0.0
    %79 = vmatpush1.msra.mxu0 0.0
    %80 = vmatprep.subr.mxu0 0.0
    %81 = vmatpush1.msra.mxu0 0.0
    %82 = vmatprep.subr.mxu0 0.0
    %83 = vmatpush1.msra.mxu0 0.0
    %84 = vmatprep.subr.mxu0 0.0
    %85 = vmatpush1.msra.mxu0 0.0
    %86 = vmatprep.subr.mxu0 0.0
    %87 = vmatpush1.msra.mxu0 0.0
    %88 = vmatprep.subr.mxu0 0.0
    %89 = vmatpush1.msra.mxu0 0.0
    %90 = vmatprep.subr.mxu0 0.0
    %91 = vmatpush1.msra.mxu0 0.0
    %92 = vmatprep.subr.mxu0 0.0
    %93 = vmatpush1.msra.mxu0 0.0
    %94 = vmatprep.subr.mxu0 0.0
    %95 = vmatpush1.msra.mxu0 0.0
    %96 = vmatprep.subr.mxu0 0.0
    %97 = vmatpush1.msra.mxu0 0.0
    %98 = vmatprep.mubr.f32.mxu0 0.0
    %99 = vmatmul.mubr.f32.gmra.mrb[0].mxu0 %v29
    %v100 = vpop.f32.mrb[0].mxu0
    %v101 = vadd.f32 0.0, %v100
    %v102 = vpop.f32.mrb[0].mxu0
    %103 = vmatprep.mubr.f32.mxu0 0.0
    %104 = vmatmul.mubr.f32.gmra.mrb[0].mxu0 %v32
    %v105 = vpop.f32.mrb[0].mxu0
    %v106 = vadd.f32 0.0, %v105
    %v107 = vpop.f32.mrb[0].mxu0
    %108 = vdwg.mxu0
    %v109 = vtanh.pop %v101
    %v110 = vtanh.pop %v106
    %v111 = vld [vmem:[%s2] sm:$0xff]
    %v112 = vld [vmem:[%s2 + $0x8] sm:$0xff]
    %vm113 = vcmask 130048
    %v115 = vsel %vm113, %v109, 0
    %v118 = vsel %vm113, %v110, 0
    %120 = vmatprep.subr.mxu0 0.0
    %121 = vmatpush1.msra.mxu0 %v111
    %122 = vmatprep.subr.mxu0 0.0
    %123 = vmatpush1.msra.mxu0 %v112
    %124 = vmatprep.subr.mxu0 0.0
    %125 = vmatpush1.msra.mxu0 0.0
    %126 = vmatprep.subr.mxu0 0.0
    %127 = vmatpush1.msra.mxu0 0.0
    %128 = vmatprep.subr.mxu0 0.0
    %129 = vmatpush1.msra.mxu0 0.0
    %130 = vmatprep.subr.mxu0 0.0
    %131 = vmatpush1.msra.mxu0 0.0
    %132 = vmatprep.subr.mxu0 0.0
    %133 = vmatpush1.msra.mxu0 0.0
    %134 = vmatprep.subr.mxu0 0.0
    %135 = vmatpush1.msra.mxu0 0.0
    %136 = vmatprep.subr.mxu0 0.0
    %137 = vmatpush1.msra.mxu0 0.0
    %138 = vmatprep.subr.mxu0 0.0
    %139 = vmatpush1.msra.mxu0 0.0
    %140 = vmatprep.subr.mxu0 0.0
    %141 = vmatpush1.msra.mxu0 0.0
    %142 = vmatprep.subr.mxu0 0.0
    %143 = vmatpush1.msra.mxu0 0.0
    %144 = vmatprep.subr.mxu0 0.0
    %145 = vmatpush1.msra.mxu0 0.0
    %146 = vmatprep.subr.mxu0 0.0
    %147 = vmatpush1.msra.mxu0 0.0
    %148 = vmatprep.subr.mxu0 0.0
    %149 = vmatpush1.msra.mxu0 0.0
    %150 = vmatprep.subr.mxu0 0.0
    %151 = vmatpush1.msra.mxu0 0.0
    %152 = vmatprep.subr.mxu0 0.0
    %153 = vmatpush1.msra.mxu0 0.0
    %154 = vmatprep.subr.mxu0 0.0
    %155 = vmatpush1.msra.mxu0 0.0
    %156 = vmatprep.subr.mxu0 0.0
    %157 = vmatpush1.msra.mxu0 0.0
    %158 = vmatprep.subr.mxu0 0.0
    %159 = vmatpush1.msra.mxu0 0.0
    %160 = vmatprep.subr.mxu0 0.0
    %161 = vmatpush1.msra.mxu0 0.0
    %162 = vmatprep.subr.mxu0 0.0
    %163 = vmatpush1.msra.mxu0 0.0
    %164 = vmatprep.subr.mxu0 0.0
    %165 = vmatpush1.msra.mxu0 0.0
    %166 = vmatprep.subr.mxu0 0.0
    %167 = vmatpush1.msra.mxu0 0.0
    %168 = vmatprep.subr.mxu0 0.0
    %169 = vmatpush1.msra.mxu0 0.0
    %170 = vmatprep.subr.mxu0 0.0
    %171 = vmatpush1.msra.mxu0 0.0
    %172 = vmatprep.subr.mxu0 0.0
    %173 = vmatpush1.msra.mxu0 0.0
    %174 = vmatprep.subr.mxu0 0.0
    %175 = vmatpush1.msra.mxu0 0.0
    %176 = vmatprep.subr.mxu0 0.0
    %177 = vmatpush1.msra.mxu0 0.0
    %178 = vmatprep.subr.mxu0 0.0
    %179 = vmatpush1.msra.mxu0 0.0
    %180 = vmatprep.subr.mxu0 0.0
    %181 = vmatpush1.msra.mxu0 0.0
    %182 = vmatprep.subr.mxu0 0.0
    %183 = vmatpush1.msra.mxu0 0.0
    %184 = vmatprep.mubr.f32.mxu0 0.0
    %185 = vmatmul.mubr.f32.gmra.mrb[0].mxu0 %v115
    %v186 = vpop.f32.mrb[0].mxu0
    %v187 = vadd.f32 0.0, %v186
    %v188 = vpop.f32.mrb[0].mxu0
    %189 = vmatprep.mubr.f32.mxu0 0.0
    %190 = vmatmul.mubr.f32.gmra.mrb[0].mxu0 %v118
    %v191 = vpop.f32.mrb[0].mxu0
    %v192 = vadd.f32 0.0, %v191
    %v193 = vpop.f32.mrb[0].mxu0
    %194 = vdwg.mxu0
    %v195 = vld [vmem:[%s3] sm:$0xff]
    %v196 = vld [vmem:[%s3 + $0x8] sm:$0xff]
    %198 = vset.pattern.permute.xlu0 0
    %199 = vperm.xlu0 %198, %v195
    %v200 = vpop.permute.xlu0 %199
    %203 = vset.pattern.permute.xlu0 0
    %204 = vperm.xlu0 %203, %v196
    %v205 = vpop.permute.xlu0 %204
    %v207 = vmul.f32 %v187, %v200
    %v208 = vmul.f32 %v192, %v205
    %vm209 = vcmask 31744
    %v210 = vsel %vm209, %v207, -inf
    %v211 = vrot.slane %v210, 4
    %v212 = vmax.f32 %v210, %v211
    %v213 = vrot.slane %v212, 2
    %v214 = vmax.f32 %v212, %v213
    %v215 = vrot.slane %v214, 1
    %v216 = vmax.f32 %v214, %v215
    %v217 = vsel %vm209, %v208, -inf
    %v218 = vrot.slane %v217, 4
    %v219 = vmax.f32 %v217, %v218
    %v220 = vrot.slane %v219, 2
    %v221 = vmax.f32 %v219, %v220
    %v222 = vrot.slane %v221, 1
    %v223 = vmax.f32 %v221, %v222
    %v224 = vsub.f32 %v207, %v216
    %v225 = vsub.f32 %v208, %v223
    %v226 = vmul.f32 %v224, 1.442695
    %v227 = vpow.pop %v226
    %v228 = vmul.f32 %v225, 1.442695
    %v229 = vpow.pop %v228
    %v230 = vsel %vm209, %v227, 0.0
    %v231 = vrot.slane %v230, 4
    %v232 = vadd.f32 %v230, %v231
    %v233 = vrot.slane %v232, 2
    %v234 = vadd.f32 %v232, %v233
    %v235 = vrot.slane %v234, 1
    %v236 = vadd.f32 %v234, %v235
    %v237 = vsel %vm209, %v229, 0.0
    %v238 = vrot.slane %v237, 4
    %v239 = vadd.f32 %v237, %v238
    %v240 = vrot.slane %v239, 2
    %v241 = vadd.f32 %v239, %v240
    %v242 = vrot.slane %v241, 1
    %v243 = vadd.f32 %v241, %v242
    %v244 = vrcp.pop %v236
    %v245 = vmul.f32 %v227, %v244
    %v246 = vrcp.pop %v243
    %v247 = vmul.f32 %v229, %v246
    %v248 = vmul.f32 %v245, %v200
    %v249 = vmul.f32 %v247, %v205
    %v250 = vsel %vm209, %v248, 0.0
    %v251 = vrot.slane %v250, 4
    %v252 = vadd.f32 %v250, %v251
    %v253 = vrot.slane %v252, 2
    %v254 = vadd.f32 %v252, %v253
    %v255 = vrot.slane %v254, 1
    %v256 = vadd.f32 %v254, %v255
    %v257 = vsel %vm209, %v249, 0.0
    %v258 = vrot.slane %v257, 4
    %v259 = vadd.f32 %v257, %v258
    %v260 = vrot.slane %v259, 2
    %v261 = vadd.f32 %v259, %v260
    %v262 = vrot.slane %v261, 1
    %v263 = vadd.f32 %v261, %v262
    %v264 = vadd.f32 %v256, 1e-13
    %v265 = vadd.f32 %v263, 1e-13
    %v266 = vrcp.pop %v264
    %v267 = vmul.f32 %v248, %v266
    %v268 = vrcp.pop %v265
    %v269 = vmul.f32 %v249, %v268
    %270 = vst.msk [vmem:[%s4] sm:$0xff] %vm209, %v267
    %271 = vst.msk [vmem:[%s4 + $0x8] sm:$0xff] %vm209, %v269
    %272 = vxpose.xlu0.b32.start [1/16] %v267, 128
    %273 = vxpose.xlu0.b32.cont [2/16] 0.0, 128
    %274 = vxpose.xlu0.b32.cont [3/16] 0.0, 128
    %275 = vxpose.xlu0.b32.cont [4/16] 0.0, 128
    %276 = vxpose.xlu0.b32.cont [5/16] 0.0, 128
    %277 = vxpose.xlu0.b32.cont [6/16] 0.0, 128
    %278 = vxpose.xlu0.b32.cont [7/16] 0.0, 128
    %279 = vxpose.xlu0.b32.cont [8/16] 0.0, 128
    %280 = vxpose.xlu0.b32.cont [9/16] 0.0, 128
    %281 = vxpose.xlu0.b32.cont [10/16] 0.0, 128
    %282 = vxpose.xlu0.b32.cont [11/16] 0.0, 128
    %283 = vxpose.xlu0.b32.cont [12/16] 0.0, 128
    %284 = vxpose.xlu0.b32.cont [13/16] 0.0, 128
    %285 = vxpose.xlu0.b32.cont [14/16] 0.0, 128
    %286 = vxpose.xlu0.b32.cont [15/16] 0.0, 128
    %287 = vxpose.xlu0.b32.end [16/16] 0.0, 128
    %v288 = vpop.trf.xlu0
    %v289 = vpop.trf.xlu0
    %v290 = vpop.trf.xlu0
    %v291 = vpop.trf.xlu0
    %v292 = vpop.trf.xlu0
    %v293 = vpop.trf.xlu0
    %v294 = vpop.trf.xlu0
    %v295 = vpop.trf.xlu0
    %v296 = vpop.trf.xlu0
    %v297 = vpop.trf.xlu0
    %v298 = vpop.trf.xlu0
    %v299 = vpop.trf.xlu0
    %v300 = vpop.trf.xlu0
    %v301 = vpop.trf.xlu0
    %v302 = vpop.trf.xlu0
    %v303 = vpop.trf.xlu0
    %vm304 = vcmask 64512
    %v306 = vsel %vm304, %v288, 0
    %308 = vmatprep.subr.mxu0 0.0
    %309 = vmatpush1.msra.mxu0 %v21
    %310 = vmatprep.subr.mxu0 0.0
    %311 = vmatpush1.msra.mxu0 0.0
    %312 = vmatprep.subr.mxu0 0.0
    %313 = vmatpush1.msra.mxu0 0.0
    %314 = vmatprep.subr.mxu0 0.0
    %315 = vmatpush1.msra.mxu0 0.0
    %316 = vmatprep.subr.mxu0 0.0
    %317 = vmatpush1.msra.mxu0 0.0
    %318 = vmatprep.subr.mxu0 0.0
    %319 = vmatpush1.msra.mxu0 0.0
    %320 = vmatprep.subr.mxu0 0.0
    %321 = vmatpush1.msra.mxu0 0.0
    %322 = vmatprep.subr.mxu0 0.0
    %323 = vmatpush1.msra.mxu0 0.0
    %324 = vmatprep.subr.mxu0 0.0
    %325 = vmatpush1.msra.mxu0 0.0
    %326 = vmatprep.subr.mxu0 0.0
    %327 = vmatpush1.msra.mxu0 0.0
    %328 = vmatprep.subr.mxu0 0.0
    %329 = vmatpush1.msra.mxu0 0.0
    %330 = vmatprep.subr.mxu0 0.0
    %331 = vmatpush1.msra.mxu0 0.0
    %332 = vmatprep.subr.mxu0 0.0
    %333 = vmatpush1.msra.mxu0 0.0
    %334 = vmatprep.subr.mxu0 0.0
    %335 = vmatpush1.msra.mxu0 0.0
    %336 = vmatprep.subr.mxu0 0.0
    %337 = vmatpush1.msra.mxu0 0.0
    %338 = vmatprep.subr.mxu0 0.0
    %339 = vmatpush1.msra.mxu0 0.0
    %340 = vmatprep.subr.mxu0 0.0
    %341 = vmatpush1.msra.mxu0 0.0
    %342 = vmatprep.subr.mxu0 0.0
    %343 = vmatpush1.msra.mxu0 0.0
    %344 = vmatprep.subr.mxu0 0.0
    %345 = vmatpush1.msra.mxu0 0.0
    %346 = vmatprep.subr.mxu0 0.0
    %347 = vmatpush1.msra.mxu0 0.0
    %348 = vmatprep.subr.mxu0 0.0
    %349 = vmatpush1.msra.mxu0 0.0
    %350 = vmatprep.subr.mxu0 0.0
    %351 = vmatpush1.msra.mxu0 0.0
    %352 = vmatprep.subr.mxu0 0.0
    %353 = vmatpush1.msra.mxu0 0.0
    %354 = vmatprep.subr.mxu0 0.0
    %355 = vmatpush1.msra.mxu0 0.0
    %356 = vmatprep.subr.mxu0 0.0
    %357 = vmatpush1.msra.mxu0 0.0
    %358 = vmatprep.subr.mxu0 0.0
    %359 = vmatpush1.msra.mxu0 0.0
    %360 = vmatprep.subr.mxu0 0.0
    %361 = vmatpush1.msra.mxu0 0.0
    %362 = vmatprep.subr.mxu0 0.0
    %363 = vmatpush1.msra.mxu0 0.0
    %364 = vmatprep.subr.mxu0 0.0
    %365 = vmatpush1.msra.mxu0 0.0
    %366 = vmatprep.subr.mxu0 0.0
    %367 = vmatpush1.msra.mxu0 0.0
    %368 = vmatprep.subr.mxu0 0.0
    %369 = vmatpush1.msra.mxu0 0.0
    %370 = vmatprep.subr.mxu0 0.0
    %371 = vmatpush1.msra.mxu0 0.0
    %372 = vmatprep.mubr.f32.mxu0 0.0
    %373 = vmatmul.mubr.f32.gmra.mrb[0].mxu0 %v306
    %v374 = vpop.f32.mrb[0].mxu0
    %v375 = vadd.f32 0.0, %v374
    %v376 = vpop.f32.mrb[0].mxu0
    %377 = vdwg.mxu0
    %378 = vxpose.xlu0.b32.start [1/16] %v269, 128
    %379 = vxpose.xlu0.b32.cont [2/16] 0.0, 128
    %380 = vxpose.xlu0.b32.cont [3/16] 0.0, 128
    %381 = vxpose.xlu0.b32.cont [4/16] 0.0, 128
    %382 = vxpose.xlu0.b32.cont [5/16] 0.0, 128
    %383 = vxpose.xlu0.b32.cont [6/16] 0.0, 128
    %384 = vxpose.xlu0.b32.cont [7/16] 0.0, 128
    %385 = vxpose.xlu0.b32.cont [8/16] 0.0, 128
    %386 = vxpose.xlu0.b32.cont [9/16] 0.0, 128
    %387 = vxpose.xlu0.b32.cont [10/16] 0.0, 128
    %388 = vxpose.xlu0.b32.cont [11/16] 0.0, 128
    %389 = vxpose.xlu0.b32.cont [12/16] 0.0, 128
    %390 = vxpose.xlu0.b32.cont [13/16] 0.0, 128
    %391 = vxpose.xlu0.b32.cont [14/16] 0.0, 128
    %392 = vxpose.xlu0.b32.cont [15/16] 0.0, 128
    %393 = vxpose.xlu0.b32.end [16/16] 0.0, 128
    %v394 = vpop.trf.xlu0
    %v395 = vpop.trf.xlu0
    %v396 = vpop.trf.xlu0
    %v397 = vpop.trf.xlu0
    %v398 = vpop.trf.xlu0
    %v399 = vpop.trf.xlu0
    %v400 = vpop.trf.xlu0
    %v401 = vpop.trf.xlu0
    %v402 = vpop.trf.xlu0
    %v403 = vpop.trf.xlu0
    %v404 = vpop.trf.xlu0
    %v405 = vpop.trf.xlu0
    %v406 = vpop.trf.xlu0
    %v407 = vpop.trf.xlu0
    %v408 = vpop.trf.xlu0
    %v409 = vpop.trf.xlu0
    %v411 = vsel %vm304, %v394, 0
    %413 = vmatprep.subr.mxu0 0.0
    %414 = vmatpush1.msra.mxu0 %v22
    %415 = vmatprep.subr.mxu0 0.0
    %416 = vmatpush1.msra.mxu0 0.0
    %417 = vmatprep.subr.mxu0 0.0
    %418 = vmatpush1.msra.mxu0 0.0
    %419 = vmatprep.subr.mxu0 0.0
    %420 = vmatpush1.msra.mxu0 0.0
    %421 = vmatprep.subr.mxu0 0.0
    %422 = vmatpush1.msra.mxu0 0.0
    %423 = vmatprep.subr.mxu0 0.0
    %424 = vmatpush1.msra.mxu0 0.0
    %425 = vmatprep.subr.mxu0 0.0
    %426 = vmatpush1.msra.mxu0 0.0
    %427 = vmatprep.subr.mxu0 0.0
    %428 = vmatpush1.msra.mxu0 0.0
    %429 = vmatprep.subr.mxu0 0.0
    %430 = vmatpush1.msra.mxu0 0.0
    %431 = vmatprep.subr.mxu0 0.0
    %432 = vmatpush1.msra.mxu0 0.0
    %433 = vmatprep.subr.mxu0 0.0
    %434 = vmatpush1.msra.mxu0 0.0
    %435 = vmatprep.subr.mxu0 0.0
    %436 = vmatpush1.msra.mxu0 0.0
    %437 = vmatprep.subr.mxu0 0.0
    %438 = vmatpush1.msra.mxu0 0.0
    %439 = vmatprep.subr.mxu0 0.0
    %440 = vmatpush1.msra.mxu0 0.0
    %441 = vmatprep.subr.mxu0 0.0
    %442 = vmatpush1.msra.mxu0 0.0
    %443 = vmatprep.subr.mxu0 0.0
    %444 = vmatpush1.msra.mxu0 0.0
    %445 = vmatprep.subr.mxu0 0.0
    %446 = vmatpush1.msra.mxu0 0.0
    %447 = vmatprep.subr.mxu0 0.0
    %448 = vmatpush1.msra.mxu0 0.0
    %449 = vmatprep.subr.mxu0 0.0
    %450 = vmatpush1.msra.mxu0 0.0
    %451 = vmatprep.subr.mxu0 0.0
    %452 = vmatpush1.msra.mxu0 0.0
    %453 = vmatprep.subr.mxu0 0.0
    %454 = vmatpush1.msra.mxu0 0.0
    %455 = vmatprep.subr.mxu0 0.0
    %456 = vmatpush1.msra.mxu0 0.0
    %457 = vmatprep.subr.mxu0 0.0
    %458 = vmatpush1.msra.mxu0 0.0
    %459 = vmatprep.subr.mxu0 0.0
    %460 = vmatpush1.msra.mxu0 0.0
    %461 = vmatprep.subr.mxu0 0.0
    %462 = vmatpush1.msra.mxu0 0.0
    %463 = vmatprep.subr.mxu0 0.0
    %464 = vmatpush1.msra.mxu0 0.0
    %465 = vmatprep.subr.mxu0 0.0
    %466 = vmatpush1.msra.mxu0 0.0
    %467 = vmatprep.subr.mxu0 0.0
    %468 = vmatpush1.msra.mxu0 0.0
    %469 = vmatprep.subr.mxu0 0.0
    %470 = vmatpush1.msra.mxu0 0.0
    %471 = vmatprep.subr.mxu0 0.0
    %472 = vmatpush1.msra.mxu0 0.0
    %473 = vmatprep.subr.mxu0 0.0
    %474 = vmatpush1.msra.mxu0 0.0
    %475 = vmatprep.subr.mxu0 0.0
    %476 = vmatpush1.msra.mxu0 0.0
    %477 = vmatprep.mubr.f32.mxu0 0.0
    %478 = vmatmul.mubr.f32.gmra.mrb[0].mxu0 %v411
    %v479 = vpop.f32.mrb[0].mxu0
    %v480 = vadd.f32 0.0, %v479
    %v481 = vpop.f32.mrb[0].mxu0
    %482 = vdwg.mxu0
    %vm483 = vcmask 257024
    %484 = vst.msk [vmem:[#allocation2] sm:$0xf] %vm483, %v375
    %485 = vst.msk [vmem:[#allocation2 + $0x4] sm:$0xf] %vm483, %v480
    %486 = vmatprep.subr.mxu0 0.0
    %487 = vmatpush1.msra.mxu0 %v267
    %488 = vmatprep.subr.mxu0 0.0
    %489 = vmatpush1.msra.mxu0 0.0
    %490 = vmatprep.subr.mxu0 0.0
    %491 = vmatpush1.msra.mxu0 0.0
    %492 = vmatprep.subr.mxu0 0.0
    %493 = vmatpush1.msra.mxu0 0.0
    %494 = vmatprep.subr.mxu0 0.0
    %495 = vmatpush1.msra.mxu0 0.0
    %496 = vmatprep.subr.mxu0 0.0
    %497 = vmatpush1.msra.mxu0 0.0
    %498 = vmatprep.subr.mxu0 0.0
    %499 = vmatpush1.msra.mxu0 0.0
    %500 = vmatprep.subr.mxu0 0.0
    %501 = vmatpush1.msra.mxu0 0.0
    %502 = vmatprep.subr.mxu0 0.0
    %503 = vmatpush1.msra.mxu0 0.0
    %504 = vmatprep.subr.mxu0 0.0
    %505 = vmatpush1.msra.mxu0 0.0
    %506 = vmatprep.subr.mxu0 0.0
    %507 = vmatpush1.msra.mxu0 0.0
    %508 = vmatprep.subr.mxu0 0.0
    %509 = vmatpush1.msra.mxu0 0.0
    %510 = vmatprep.subr.mxu0 0.0
    %511 = vmatpush1.msra.mxu0 0.0
    %512 = vmatprep.subr.mxu0 0.0
    %513 = vmatpush1.msra.mxu0 0.0
    %514 = vmatprep.subr.mxu0 0.0
    %515 = vmatpush1.msra.mxu0 0.0
    %516 = vmatprep.subr.mxu0 0.0
    %517 = vmatpush1.msra.mxu0 0.0
    %518 = vmatprep.subr.mxu0 0.0
    %519 = vmatpush1.msra.mxu0 0.0
    %520 = vmatprep.subr.mxu0 0.0
    %521 = vmatpush1.msra.mxu0 0.0
    %522 = vmatprep.subr.mxu0 0.0
    %523 = vmatpush1.msra.mxu0 0.0
    %524 = vmatprep.subr.mxu0 0.0
    %525 = vmatpush1.msra.mxu0 0.0
    %526 = vmatprep.subr.mxu0 0.0
    %527 = vmatpush1.msra.mxu0 0.0
    %528 = vmatprep.subr.mxu0 0.0
    %529 = vmatpush1.msra.mxu0 0.0
    %530 = vmatprep.subr.mxu0 0.0
    %531 = vmatpush1.msra.mxu0 0.0
    %532 = vmatprep.subr.mxu0 0.0
    %533 = vmatpush1.msra.mxu0 0.0
    %534 = vmatprep.subr.mxu0 0.0
    %535 = vmatpush1.msra.mxu0 0.0
    %536 = vmatprep.subr.mxu0 0.0
    %537 = vmatpush1.msra.mxu0 0.0
    %538 = vmatprep.subr.mxu0 0.0
    %539 = vmatpush1.msra.mxu0 0.0
    %540 = vmatprep.subr.mxu0 0.0
    %541 = vmatpush1.msra.mxu0 0.0
    %542 = vmatprep.subr.mxu0 0.0
    %543 = vmatpush1.msra.mxu0 0.0
    %544 = vmatprep.subr.mxu0 0.0
    %545 = vmatpush1.msra.mxu0 0.0
    %546 = vmatprep.subr.mxu0 0.0
    %547 = vmatpush1.msra.mxu0 0.0
    %548 = vmatprep.subr.mxu0 0.0
    %549 = vmatpush1.msra.mxu0 0.0
    %550 = vmatprep.mubr.f32.mxu0 0.0
    %551 = vmatmul.mubr.f32.gmra.mrb[0].mxu0 %v306
    %v552 = vpop.f32.mrb[0].mxu0
    %v553 = vadd.f32 0.0, %v552
    %v554 = vpop.f32.mrb[0].mxu0
    %555 = vdwg.mxu0
    %556 = vmatprep.subr.mxu0 0.0
    %557 = vmatpush1.msra.mxu0 %v269
    %558 = vmatprep.subr.mxu0 0.0
    %559 = vmatpush1.msra.mxu0 0.0
    %560 = vmatprep.subr.mxu0 0.0
    %561 = vmatpush1.msra.mxu0 0.0
    %562 = vmatprep.subr.mxu0 0.0
    %563 = vmatpush1.msra.mxu0 0.0
    %564 = vmatprep.subr.mxu0 0.0
    %565 = vmatpush1.msra.mxu0 0.0
    %566 = vmatprep.subr.mxu0 0.0
    %567 = vmatpush1.msra.mxu0 0.0
    %568 = vmatprep.subr.mxu0 0.0
    %569 = vmatpush1.msra.mxu0 0.0
    %570 = vmatprep.subr.mxu0 0.0
    %571 = vmatpush1.msra.mxu0 0.0
    %572 = vmatprep.subr.mxu0 0.0
    %573 = vmatpush1.msra.mxu0 0.0
    %574 = vmatprep.subr.mxu0 0.0
    %575 = vmatpush1.msra.mxu0 0.0
    %576 = vmatprep.subr.mxu0 0.0
    %577 = vmatpush1.msra.mxu0 0.0
    %578 = vmatprep.subr.mxu0 0.0
    %579 = vmatpush1.msra.mxu0 0.0
    %580 = vmatprep.subr.mxu0 0.0
    %581 = vmatpush1.msra.mxu0 0.0
    %582 = vmatprep.subr.mxu0 0.0
    %583 = vmatpush1.msra.mxu0 0.0
    %584 = vmatprep.subr.mxu0 0.0
    %585 = vmatpush1.msra.mxu0 0.0
    %586 = vmatprep.subr.mxu0 0.0
    %587 = vmatpush1.msra.mxu0 0.0
    %588 = vmatprep.subr.mxu0 0.0
    %589 = vmatpush1.msra.mxu0 0.0
    %590 = vmatprep.subr.mxu0 0.0
    %591 = vmatpush1.msra.mxu0 0.0
    %592 = vmatprep.subr.mxu0 0.0
    %593 = vmatpush1.msra.mxu0 0.0
    %594 = vmatprep.subr.mxu0 0.0
    %595 = vmatpush1.msra.mxu0 0.0
    %596 = vmatprep.subr.mxu0 0.0
    %597 = vmatpush1.msra.mxu0 0.0
    %598 = vmatprep.subr.mxu0 0.0
    %599 = vmatpush1.msra.mxu0 0.0
    %600 = vmatprep.subr.mxu0 0.0
    %601 = vmatpush1.msra.mxu0 0.0
    %602 = vmatprep.subr.mxu0 0.0
    %603 = vmatpush1.msra.mxu0 0.0
    %604 = vmatprep.subr.mxu0 0.0
    %605 = vmatpush1.msra.mxu0 0.0
    %606 = vmatprep.subr.mxu0 0.0
    %607 = vmatpush1.msra.mxu0 0.0
    %608 = vmatprep.subr.mxu0 0.0
    %609 = vmatpush1.msra.mxu0 0.0
    %610 = vmatprep.subr.mxu0 0.0
    %611 = vmatpush1.msra.mxu0 0.0
    %612 = vmatprep.subr.mxu0 0.0
    %613 = vmatpush1.msra.mxu0 0.0
    %614 = vmatprep.subr.mxu0 0.0
    %615 = vmatpush1.msra.mxu0 0.0
    %616 = vmatprep.subr.mxu0 0.0
    %617 = vmatpush1.msra.mxu0 0.0
    %618 = vmatprep.subr.mxu0 0.0
    %619 = vmatpush1.msra.mxu0 0.0
    %620 = vmatprep.mubr.f32.mxu0 0.0
    %621 = vmatmul.mubr.f32.gmra.mrb[0].mxu0 %v411
    %v622 = vpop.f32.mrb[0].mxu0
    %v623 = vadd.f32 0.0, %v622
    %v624 = vpop.f32.mrb[0].mxu0
    %625 = vdwg.mxu0
    %v626 = vmul.f32 %v553, %v553
    %v627 = vmul.f32 %v623, %v623
    %vm628 = vcmask 27648
    %v629 = vsel %vm628, %v626, 0.0
    %630 = vadd.xlane.f32.xlu0 %v629
    %v631 = vpop.xlane.xlu0 %630
    %v632 = vsel %vm628, %v627, 0.0
    %633 = vadd.xlane.f32.xlu0 %v632
    %v634 = vpop.xlane.xlu0 %633
    %vm635 = vcmask 1043456
    %v636 = vsel %vm635, %v631, 0.0
    %v637 = vrot.slane %v636, 4
    %v638 = vadd.f32 %v636, %v637
    %v639 = vrot.slane %v638, 2
    %v640 = vadd.f32 %v638, %v639
    %v641 = vrot.slane %v640, 1
    %v642 = vadd.f32 %v640, %v641
    %v643 = vsel %vm635, %v634, 0.0
    %v644 = vrot.slane %v643, 4
    %v645 = vadd.f32 %v643, %v644
    %v646 = vrot.slane %v645, 2
    %v647 = vadd.f32 %v645, %v646
    %v648 = vrot.slane %v647, 1
    %v649 = vadd.f32 %v647, %v648
    %v650 = vmul.f32 %v267, %v267
    %v651 = vmul.f32 %v269, %v269
    %v652 = vsel %vm209, %v650, 0.0
    %653 = vadd.xlane.f32.xlu0 %v652
    %v654 = vpop.xlane.xlu0 %653
    %v655 = vsel %vm209, %v651, 0.0
    %656 = vadd.xlane.f32.xlu0 %v655
    %v657 = vpop.xlane.xlu0 %656
    %v658 = vrot.slane %v654, 4
    %v659 = vadd.f32 %v654, %v658
    %v660 = vrot.slane %v659, 2
    %v661 = vadd.f32 %v659, %v660
    %v662 = vrot.slane %v661, 1
    %v663 = vadd.f32 %v661, %v662
    %v664 = vrot.slane %v657, 4
    %v665 = vadd.f32 %v657, %v664
    %v666 = vrot.slane %v665, 2
    %v667 = vadd.f32 %v665, %v666
    %v668 = vrot.slane %v667, 1
    %v669 = vadd.f32 %v667, %v668
    %v670 = vmul.f32 %v663, 2.0
    %v671 = vmul.f32 %v669, 2.0
    %v672 = vsub.f32 %v642, %v670
    %v673 = vsub.f32 %v649, %v671
    %v674 = vadd.f32 %v672, 8.0
    %v675 = vadd.f32 %v673, 8.0
    %vm676 = vcmask 0
    %677 = vst.msk [vmem:[%s6] sm:$0x1] %vm676, %v674
    %678 = vst.msk [vmem:[%s6 + $0x1] sm:$0x1] %vm676, %v675
    // Predicated region
    $region18: #{tpu_custom_call.1} parent=1 // pred_check
      _
    $region19: #{tpu_custom_call.1} parent=1 // pred_check_branch
      %680 = sbr.rel (0) target = $region21
    $region20: #{tpu_custom_call.1} parent=1 // pred_region
      _
    $region21: #{tpu_custom_call.1} parent=1 // pred_fallthru
      _
    // Predicated region
    $region22: #{tpu_custom_call.1} parent=1 // pred_check
      _
    $region23: #{tpu_custom_call.1} parent=1 // pred_check_branch
      %682 = sbr.rel (0) target = $region25
    $region24: #{tpu_custom_call.1} parent=1 // pred_region
      %s684 = ssub.s32 128, 128
      %685 = vsyncadd [#allocation3], %s684
      %s686 = sshll.u32 [#allocation2], 4
      %s687 = int_to_ptr.vmem [resolvable:$true] %s686
      %692 = dma.vmem_to_hbm [thread:$0]  %s687, 128, %s5, [#allocation3], 64, 64, 4
    $region25: #{tpu_custom_call.1} parent=1 // pred_fallthru
      _
    // Predicated region
    $region26: #{tpu_custom_call.1} parent=1 // pred_check
      _
    $region27: #{tpu_custom_call.1} parent=1 // pred_check_branch
      %694 = sbr.rel (0) target = $region29
    $region28: #{tpu_custom_call.1} parent=1 // pred_region
      _
    $region29: #{tpu_custom_call.1} parent=1 // pred_fallthru
      _
    // Predicated region
    $region30: #{tpu_custom_call.1} parent=1 // pred_check
      _
    $region31: #{tpu_custom_call.1} parent=1 // pred_check_branch
      %696 = sbr.rel (0) target = $region33
    $region32: #{tpu_custom_call.1} parent=1 // pred_region
      _
    $region33: #{tpu_custom_call.1} parent=1 // pred_fallthru
      _
    // Predicated region
    $region34: #{tpu_custom_call.1} parent=1 // pred_check
      _
    $region35: #{tpu_custom_call.1} parent=1 // pred_check_branch
      %698 = sbr.rel (0) target = $region37
    $region36: #{tpu_custom_call.1} parent=1 // pred_region
      %699 = dma.done [#allocation3], 128
    $region37: #{tpu_custom_call.1} parent=1 // pred_fallthru
      _
    // Predicated region
    $region38: #{tpu_custom_call.1} parent=1 // pred_check
      _
    $region39: #{tpu_custom_call.1} parent=1 // pred_check_branch
      %701 = sbr.rel (0) target = $region41
    $region40: #{tpu_custom_call.1} parent=1 // pred_region
      _
    $region41: #{tpu_custom_call.1} parent=1 // pred_fallthru
      _
    %702 = vsyncpa [#allocation3], 1

</llo_original>
